<compile_context>
chip_gen: v6e
topology: v6e:2x2x1
jax: 0.10.0
libtpu: 0.0.40
codegen_flags: <defaults>
</compile_context>

<pallas_src>
import functools

import jax
import jax.numpy as jnp
from jax.experimental import pallas as pl
from jax.experimental.pallas import tpu as pltpu


def _fused_kernel(wp_ref, x_ref, gb_ref, o_ref, *, n_cout, eps, inv_hw):
    # wp_ref: (Cout+1, Cin)  rows [0:Cout] = conv weight, row [Cout] = pre-hardsigmoid gate
    # x_ref : (Cin,  HW)     input activations, channel-major
    # gb_ref: (Cout, 2)      col 0 = gamma, col 1 = beta
    # o_ref : (Cout, HW)

    wp = wp_ref[...]
    w = wp[:n_cout, :]                                   # (Cout, Cin)
    s = wp[n_cout:n_cout + 1, :]                         # (1, Cin) raw gate

    # Hardsigmoid gate folded into the conv weight: (hs*x) conv W == x conv (W*hs).
    hs = jnp.clip(s * (1.0 / 6.0) + 0.5, 0.0, 1.0)       # (1, Cin)
    w = w * hs                                           # (Cout, Cin)

    # 1x1 conv as a matmul on the MXU; lane-dense (Cout, HW) result.
    y = jnp.dot(w, x_ref[...], preferred_element_type=jnp.float32)   # (Cout, HW)

    # BatchNorm2d (training): two-pass biased batch statistics over N*H*W.
    mean = jnp.sum(y, axis=1, keepdims=True) * inv_hw    # (Cout, 1)
    d = y - mean                                         # centered, reused below
    var = jnp.sum(d * d, axis=1, keepdims=True) * inv_hw # (Cout, 1)

    gb = gb_ref[...]                                     # (Cout, 2)
    gamma = gb[:, 0:1]
    beta = gb[:, 1:2]
    a = gamma * jax.lax.rsqrt(var + eps)                 # gamma * inv_std
    o_ref[...] = (d * a + beta).astype(o_ref.dtype)


def fused_hsig_mul_conv_bn(x48, x52, conv_w, gamma, beta, *, eps=1e-3):
    """x48: (N, Cin, H, W), x52: (N, Cin, 1, 1), conv_w: (Cout, Cin, 1, 1)."""
    N, Cin, H, W = x48.shape
    Cout = conv_w.shape[0]
    HW = N * H * W

    # (C, HW) layout.  For N == 1 (the module's case) this is a free view.
    if N == 1:
        x_cm = x48.reshape(Cin, HW)
    else:
        # TODO(synk): for N > 1, replace this HBM transpose with a grid-over-N
        # pass that accumulates BN stats across the batch axis inside the kernel.
        x_cm = jnp.transpose(x48, (1, 0, 2, 3)).reshape(Cin, HW)

    # Pack tiny per-channel params -> 3 input DMA descriptors instead of 5.
    wp = jnp.concatenate(
        [conv_w.reshape(Cout, Cin), x52.reshape(1, Cin)], axis=0)     # (Cout+1, Cin)
    gb = jnp.stack([gamma.reshape(Cout), beta.reshape(Cout)], axis=1)  # (Cout, 2)

    out_cm = pl.pallas_call(
        functools.partial(_fused_kernel, n_cout=Cout, eps=eps, inv_hw=1.0 / HW),
        out_shape=jax.ShapeDtypeStruct((Cout, HW), x48.dtype),
        grid=(1,),
        in_specs=[
            pl.BlockSpec((Cout + 1, Cin), lambda i: (0, 0)),
            pl.BlockSpec((Cin, HW), lambda i: (0, 0)),
            pl.BlockSpec((Cout, 2), lambda i: (0, 0)),
        ],
        out_specs=pl.BlockSpec((Cout, HW), lambda i: (0, 0)),
        compiler_params=pltpu.CompilerParams(
            dimension_semantics=("arbitrary",)),
        cost_estimate=pl.CostEstimate(
            flops=2 * Cout * Cin * HW,
            transcendentals=0,
            bytes_accessed=(Cin * HW + Cout * HW + (Cout + 1) * Cin + Cout * 2) * 4,
        ),
    )(wp, x_cm, gb)

    # Back to NCHW (free reshape for N == 1).
    if N == 1:
        return out_cm.reshape(1, Cout, H, W)
    return jnp.transpose(out_cm.reshape(Cout, N, H, W), (1, 0, 2, 3))


def _reference(x48, x52, conv_w, gamma, beta, eps=1e-3):
    hs = jnp.clip(x52 / 6.0 + 0.5, 0.0, 1.0)
    xm = hs * x48                                                    # (N, Cin, H, W)
    y = jnp.einsum("nchw,oc->nohw", xm, conv_w.reshape(conv_w.shape[0], -1))
    mean = jnp.mean(y, axis=(0, 2, 3), keepdims=True)
    var = jnp.mean((y - mean) ** 2, axis=(0, 2, 3), keepdims=True)
    return (y - mean) / jnp.sqrt(var + eps) * gamma.reshape(1, -1, 1, 1) + \
        beta.reshape(1, -1, 1, 1)


if __name__ == "__main__":
    key = jax.random.PRNGKey(0)
    k1, k2, k3, k4, k5 = jax.random.split(key, 5)

    N, Cin, Cout, H, W = 1, 120, 40, 28, 28

    x48 = jax.random.normal(k1, (N, Cin, H, W), dtype=jnp.float32)
    x52 = jax.random.normal(k2, (N, Cin, 1, 1), dtype=jnp.float32)
    conv_w = jax.random.normal(k3, (Cout, Cin, 1, 1), dtype=jnp.float32) * 0.05
    gamma = jax.random.normal(k4, (Cout,), dtype=jnp.float32) * 0.1 + 1.0
    beta = jax.random.normal(k5, (Cout,), dtype=jnp.float32) * 0.1

    out = fused_hsig_mul_conv_bn(x48, x52, conv_w, gamma, beta)
    out = jax.block_until_ready(out)

    ref = _reference(x48, x52, conv_w, gamma, beta)
    assert out.shape == (N, Cout, H, W)
    assert jnp.allclose(out, ref, atol=1e-4, rtol=1e-4)

    print("KERNEL_OK")
</pallas_src>

<mosaic_0001>
module attributes {stable_mosaic.version = 11 : i64} {
  func.func @_fused_kernel(%arg0: i32, %arg1: memref<41x120xf32, #tpu.memory_space<vmem>>, %arg2: memref<120x784xf32, #tpu.memory_space<vmem>>, %arg3: memref<40x2xf32, #tpu.memory_space<vmem>>, %arg4: memref<40x784xf32, #tpu.memory_space<vmem>>) attributes {dimension_semantics = [#tpu.dimension_semantics<arbitrary>], iteration_bounds = array<i64: 1>, scalar_prefetch = 0 : i64, scratch_operands = 0 : i64, tpu.core_type = #tpu.core_type<tc>, window_params = [{pipeline_mode = #tpu.pipeline_mode<synchronous>, transform_indices = @transform_0, window_bounds = array<i64: 41, 120>}, {pipeline_mode = #tpu.pipeline_mode<synchronous>, transform_indices = @transform_1, window_bounds = array<i64: 120, 784>}, {pipeline_mode = #tpu.pipeline_mode<synchronous>, transform_indices = @transform_2, window_bounds = array<i64: 40, 2>}, {pipeline_mode = #tpu.pipeline_mode<synchronous>, transform_indices = @transform_3, window_bounds = array<i64: 40, 784>}]} {
    %c0 = arith.constant 0 : index
    %c0_0 = arith.constant 0 : index
    %0 = vector.load %arg1[%c0, %c0_0] : memref<41x120xf32, #tpu.memory_space<vmem>>, vector<41x120xf32>
    %1 = vector.extract_strided_slice %0 {offsets = [0, 0], sizes = [40, 120], strides = [1, 1]} : vector<41x120xf32> to vector<40x120xf32>
    %2 = vector.extract_strided_slice %0 {offsets = [40, 0], sizes = [1, 120], strides = [1, 1]} : vector<41x120xf32> to vector<1x120xf32>
    %cst = arith.constant 0.166666672 : f32
    %3 = vector.broadcast %cst : f32 to vector<1x120xf32>
    %4 = arith.mulf %2, %3 : vector<1x120xf32>
    %cst_1 = arith.constant 5.000000e-01 : f32
    %5 = vector.broadcast %cst_1 : f32 to vector<1x120xf32>
    %6 = arith.addf %4, %5 : vector<1x120xf32>
    %cst_2 = arith.constant 0.000000e+00 : f32
    %cst_3 = arith.constant 1.000000e+00 : f32
    %7 = vector.broadcast %cst_2 : f32 to vector<1x120xf32>
    %8 = arith.maximumf %7, %6 : vector<1x120xf32>
    %9 = vector.broadcast %cst_3 : f32 to vector<1x120xf32>
    %10 = arith.minimumf %9, %8 : vector<1x120xf32>
    %11 = vector.broadcast %10 : vector<1x120xf32> to vector<40x120xf32>
    %12 = arith.mulf %1, %11 : vector<40x120xf32>
    %c0_4 = arith.constant 0 : index
    %c0_5 = arith.constant 0 : index
    %13 = vector.load %arg2[%c0_4, %c0_5] : memref<120x784xf32, #tpu.memory_space<vmem>>, vector<120x784xf32>
    %cst_6 = arith.constant dense<0.000000e+00> : vector<40x784xf32>
    %14 = tpu.matmul %12, %13, %cst_6 {dimension_numbers = #tpu.dot_dimension_numbers<[1], [0], [0], [1], [0, 0, 1, 1], [], []>} : vector<40x120xf32>, vector<120x784xf32>, vector<40x784xf32> -> vector<40x784xf32>
    %cst_7 = arith.constant dense<0.000000e+00> : vector<40xf32>
    %15 = vector.multi_reduction <add>, %14, %cst_7 [1] : vector<40x784xf32> to vector<40xf32>
    %16 = vector.shape_cast %15 : vector<40xf32> to vector<40x1xf32>
    %cst_8 = arith.constant 0.00127551018 : f32
    %17 = vector.broadcast %cst_8 : f32 to vector<40x1xf32>
    %18 = arith.mulf %16, %17 : vector<40x1xf32>
    %19 = vector.broadcast %18 : vector<40x1xf32> to vector<40x784xf32>
    %20 = arith.subf %14, %19 : vector<40x784xf32>
    %21 = arith.mulf %20, %20 : vector<40x784xf32>
    %cst_9 = arith.constant dense<0.000000e+00> : vector<40xf32>
    %22 = vector.multi_reduction <add>, %21, %cst_9 [1] : vector<40x784xf32> to vector<40xf32>
    %23 = vector.shape_cast %22 : vector<40xf32> to vector<40x1xf32>
    %cst_10 = arith.constant 0.00127551018 : f32
    %24 = vector.broadcast %cst_10 : f32 to vector<40x1xf32>
    %25 = arith.mulf %23, %24 : vector<40x1xf32>
    %c0_11 = arith.constant 0 : index
    %c0_12 = arith.constant 0 : index
    %26 = vector.load %arg3[%c0_11, %c0_12] : memref<40x2xf32, #tpu.memory_space<vmem>>, vector<40x2xf32>
    %27 = vector.extract_strided_slice %26 {offsets = [0, 0], sizes = [40, 1], strides = [1, 1]} : vector<40x2xf32> to vector<40x1xf32>
    %28 = vector.extract_strided_slice %26 {offsets = [0, 1], sizes = [40, 1], strides = [1, 1]} : vector<40x2xf32> to vector<40x1xf32>
    %cst_13 = arith.constant 1.000000e-03 : f32
    %29 = vector.broadcast %cst_13 : f32 to vector<40x1xf32>
    %30 = arith.addf %25, %29 : vector<40x1xf32>
    %31 = math.rsqrt %30 : vector<40x1xf32>
    %32 = arith.mulf %27, %31 : vector<40x1xf32>
    %33 = vector.broadcast %32 : vector<40x1xf32> to vector<40x784xf32>
    %34 = arith.mulf %20, %33 : vector<40x784xf32>
    %35 = vector.broadcast %28 : vector<40x1xf32> to vector<40x784xf32>
    %36 = arith.addf %34, %35 : vector<40x784xf32>
    %c0_14 = arith.constant 0 : index
    %c0_15 = arith.constant 0 : index
    %37 = vector.load %arg4[%c0_14, %c0_15] : memref<40x784xf32, #tpu.memory_space<vmem>>, vector<40x784xf32>
    tpu.vector_store %arg4[%c0_14, %c0_15], %36 {strides = array<i32>} : memref<40x784xf32, #tpu.memory_space<vmem>>, vector<40x784xf32>,
    return
  }
  func.func @transform_0(%arg0: i32) -> (i32, i32) {
    %c0_i32 = arith.constant 0 : i32
    %c0_i32_0 = arith.constant 0 : i32
    %c0_i32_1 = arith.constant 0 : i32
    return %c0_i32, %c0_i32_0 : i32, i32
  }
  func.func @transform_1(%arg0: i32) -> (i32, i32) {
    %c0_i32 = arith.constant 0 : i32
    %c0_i32_0 = arith.constant 0 : i32
    %c0_i32_1 = arith.constant 0 : i32
    return %c0_i32, %c0_i32_0 : i32, i32
  }
  func.func @transform_2(%arg0: i32) -> (i32, i32) {
    %c0_i32 = arith.constant 0 : i32
    %c0_i32_0 = arith.constant 0 : i32
    %c0_i32_1 = arith.constant 0 : i32
    return %c0_i32, %c0_i32_0 : i32, i32
  }
  func.func @transform_3(%arg0: i32) -> (i32, i32) {
    %c0_i32 = arith.constant 0 : i32
    %c0_i32_0 = arith.constant 0 : i32
    %c0_i32_1 = arith.constant 0 : i32
    return %c0_i32, %c0_i32_0 : i32, i32
  }
}

</mosaic_0001>

<llo_original>
// kernel: tpu_custom_call.1
$region0: #{tpu_custom_call.1}
  #allocation0 [shape = 'u32[]', space=smem, size = 0x4, offset = 0x4, fixed_abs, tag = 'smem constant byte address 0x4 - core index']
  #allocation1 [shape = 'u32[144,128]{1,0:T(1,128)}', space=vmem, size = 0x12000, scoped, tag = 'internal scratch']
  %s0 = inlined_call_operand.vmem [shape: f32[41,120], index: 0, kind: input, shape index: {}]
  %s1 = inlined_call_operand.vmem [shape: f32[120,784], index: 1, kind: input, shape index: {}]
  %s2 = inlined_call_operand.vmem [shape: f32[40,2], index: 2, kind: input, shape index: {}]
  %s3 = inlined_call_operand.hbm [shape: f32[40,784], index: 3, kind: output, shape index: {}]
  %s4 = sld [smem:[#allocation0]]
  $region22: #{tpu_custom_call.1} parent=0
    _
  %s6 = ssub.s32 1, %s4
  %s7 = scalar_select 0, %s6, %s4
  $region1: #{tpu_custom_call.1} parent=0
    #allocation2 [shape = 'u8[143360]{0}', space=vmem, size = 0x23000, scoped, tag = 'output window, operand 0, single buffered']
    #allocation3 [shape = 's32[1]{0}', space=sflag, size = 0x4, scoped, tag = 'scoped memory for tpu_custom_call.1']
    %8 = vsyncpa [#allocation3], 0
    // Predicated region
    $region2: #{tpu_custom_call.1} parent=1 // pred_check
      _
    $region3: #{tpu_custom_call.1} parent=1 // pred_check_branch
      %10 = sbr.rel (0) target = $region5
    $region4: #{tpu_custom_call.1} parent=1 // pred_region
      _
    $region5: #{tpu_custom_call.1} parent=1 // pred_fallthru
      _
    // Predicated region
    $region6: #{tpu_custom_call.1} parent=1 // pred_check
      _
    $region7: #{tpu_custom_call.1} parent=1 // pred_check_branch
      %12 = sbr.rel (0) target = $region9
    $region8: #{tpu_custom_call.1} parent=1 // pred_region
      _
    $region9: #{tpu_custom_call.1} parent=1 // pred_fallthru
      _
    // Predicated region
    $region10: #{tpu_custom_call.1} parent=1 // pred_check
      _
    $region11: #{tpu_custom_call.1} parent=1 // pred_check_branch
      %14 = sbr.rel (0) target = $region13
    $region12: #{tpu_custom_call.1} parent=1 // pred_region
      _
    $region13: #{tpu_custom_call.1} parent=1 // pred_fallthru
      _
    %v15 = vld [vmem:[%s0] sm:$0xff]
    %v16 = vld [vmem:[%s0 + $0x8] sm:$0xff]
    %v17 = vld [vmem:[%s0 + $0x10] sm:$0xff]
    %v18 = vld [vmem:[%s0 + $0x18] sm:$0xff]
    %v19 = vld [vmem:[%s0 + $0x20] sm:$0xff]
    %v20 = vld [vmem:[%s0 + $0x28] sm:$0x1]
    %v21 = vmul.f32 %v20, 0.16666667
    %v22 = vadd.f32 %v21, 0.5
    %v23 = vmax.f32 %v22, 0.0
    %v24 = vmin.f32 %v23, 1.0
    %v25 = vlaneseq
    %v26 = vshrl.u32 %v25, 7
    %v27 = vsub.s32 0, %v26
    %v28 = vrot.slane %v24, %v27
    %v29 = vmul.f32 %v15, %v28
    %v30 = vmul.f32 %v16, %v28
    %v31 = vmul.f32 %v17, %v28
    %v32 = vmul.f32 %v18, %v28
    %v33 = vmul.f32 %v19, %v28
    %v34 = vld [vmem:[%s1] sm:$0xff]
    %v35 = vld [vmem:[%s1 + $0x8] sm:$0xff]
    %v36 = vld [vmem:[%s1 + $0x10] sm:$0xff]
    %v37 = vld [vmem:[%s1 + $0x18] sm:$0xff]
    %v38 = vld [vmem:[%s1 + $0x20] sm:$0xff]
    %v39 = vld [vmem:[%s1 + $0x28] sm:$0xff]
    %v40 = vld [vmem:[%s1 + $0x30] sm:$0xff]
    %v41 = vld [vmem:[%s1 + $0x38] sm:$0xff]
    %v42 = vld [vmem:[%s1 + $0x40] sm:$0xff]
    %v43 = vld [vmem:[%s1 + $0x48] sm:$0xff]
    %v44 = vld [vmem:[%s1 + $0x50] sm:$0xff]
    %v45 = vld [vmem:[%s1 + $0x58] sm:$0xff]
    %v46 = vld [vmem:[%s1 + $0x60] sm:$0xff]
    %v47 = vld [vmem:[%s1 + $0x68] sm:$0xff]
    %v48 = vld [vmem:[%s1 + $0x70] sm:$0xff]
    %v49 = vld [vmem:[%s1 + $0x78] sm:$0xff]
    %v50 = vld [vmem:[%s1 + $0x80] sm:$0xff]
    %v51 = vld [vmem:[%s1 + $0x88] sm:$0xff]
    %v52 = vld [vmem:[%s1 + $0x90] sm:$0xff]
    %v53 = vld [vmem:[%s1 + $0x98] sm:$0xff]
    %v54 = vld [vmem:[%s1 + $0xa0] sm:$0xff]
    %v55 = vld [vmem:[%s1 + $0xa8] sm:$0xff]
    %v56 = vld [vmem:[%s1 + $0xb0] sm:$0xff]
    %v57 = vld [vmem:[%s1 + $0xb8] sm:$0xff]
    %v58 = vld [vmem:[%s1 + $0xc0] sm:$0xff]
    %v59 = vld [vmem:[%s1 + $0xc8] sm:$0xff]
    %v60 = vld [vmem:[%s1 + $0xd0] sm:$0xff]
    %v61 = vld [vmem:[%s1 + $0xd8] sm:$0xff]
    %v62 = vld [vmem:[%s1 + $0xe0] sm:$0xff]
    %v63 = vld [vmem:[%s1 + $0xe8] sm:$0xff]
    %v64 = vld [vmem:[%s1 + $0xf0] sm:$0xff]
    %v65 = vld [vmem:[%s1 + $0xf8] sm:$0xff]
    %v66 = vld [vmem:[%s1 + $0x100] sm:$0xff]
    %v67 = vld [vmem:[%s1 + $0x108] sm:$0xff]
    %v68 = vld [vmem:[%s1 + $0x110] sm:$0xff]
    %v69 = vld [vmem:[%s1 + $0x118] sm:$0xff]
    %v70 = vld [vmem:[%s1 + $0x120] sm:$0xff]
    %v71 = vld [vmem:[%s1 + $0x128] sm:$0xff]
    %v72 = vld [vmem:[%s1 + $0x130] sm:$0xff]
    %v73 = vld [vmem:[%s1 + $0x138] sm:$0xff]
    %v74 = vld [vmem:[%s1 + $0x140] sm:$0xff]
    %v75 = vld [vmem:[%s1 + $0x148] sm:$0xff]
    %v76 = vld [vmem:[%s1 + $0x150] sm:$0xff]
    %v77 = vld [vmem:[%s1 + $0x158] sm:$0xff]
    %v78 = vld [vmem:[%s1 + $0x160] sm:$0xff]
    %v79 = vld [vmem:[%s1 + $0x168] sm:$0xff]
    %v80 = vld [vmem:[%s1 + $0x170] sm:$0xff]
    %v81 = vld [vmem:[%s1 + $0x178] sm:$0xff]
    %v82 = vld [vmem:[%s1 + $0x180] sm:$0xff]
    %v83 = vld [vmem:[%s1 + $0x188] sm:$0xff]
    %v84 = vld [vmem:[%s1 + $0x190] sm:$0xff]
    %v85 = vld [vmem:[%s1 + $0x198] sm:$0xff]
    %v86 = vld [vmem:[%s1 + $0x1a0] sm:$0xff]
    %v87 = vld [vmem:[%s1 + $0x1a8] sm:$0xff]
    %v88 = vld [vmem:[%s1 + $0x1b0] sm:$0xff]
    %v89 = vld [vmem:[%s1 + $0x1b8] sm:$0xff]
    %v90 = vld [vmem:[%s1 + $0x1c0] sm:$0xff]
    %v91 = vld [vmem:[%s1 + $0x1c8] sm:$0xff]
    %v92 = vld [vmem:[%s1 + $0x1d0] sm:$0xff]
    %v93 = vld [vmem:[%s1 + $0x1d8] sm:$0xff]
    %v94 = vld [vmem:[%s1 + $0x1e0] sm:$0xff]
    %v95 = vld [vmem:[%s1 + $0x1e8] sm:$0xff]
    %v96 = vld [vmem:[%s1 + $0x1f0] sm:$0xff]
    %v97 = vld [vmem:[%s1 + $0x1f8] sm:$0xff]
    %v98 = vld [vmem:[%s1 + $0x200] sm:$0xff]
    %v99 = vld [vmem:[%s1 + $0x208] sm:$0xff]
    %v100 = vld [vmem:[%s1 + $0x210] sm:$0xff]
    %v101 = vld [vmem:[%s1 + $0x218] sm:$0xff]
    %v102 = vld [vmem:[%s1 + $0x220] sm:$0xff]
    %v103 = vld [vmem:[%s1 + $0x228] sm:$0xff]
    %v104 = vld [vmem:[%s1 + $0x230] sm:$0xff]
    %v105 = vld [vmem:[%s1 + $0x238] sm:$0xff]
    %v106 = vld [vmem:[%s1 + $0x240] sm:$0xff]
    %v107 = vld [vmem:[%s1 + $0x248] sm:$0xff]
    %v108 = vld [vmem:[%s1 + $0x250] sm:$0xff]
    %v109 = vld [vmem:[%s1 + $0x258] sm:$0xff]
    %v110 = vld [vmem:[%s1 + $0x260] sm:$0xff]
    %v111 = vld [vmem:[%s1 + $0x268] sm:$0xff]
    %v112 = vld [vmem:[%s1 + $0x270] sm:$0xff]
    %v113 = vld [vmem:[%s1 + $0x278] sm:$0xff]
    %v114 = vld [vmem:[%s1 + $0x280] sm:$0xff]
    %v115 = vld [vmem:[%s1 + $0x288] sm:$0xff]
    %v116 = vld [vmem:[%s1 + $0x290] sm:$0xff]
    %v117 = vld [vmem:[%s1 + $0x298] sm:$0xff]
    %v118 = vld [vmem:[%s1 + $0x2a0] sm:$0xff]
    %v119 = vld [vmem:[%s1 + $0x2a8] sm:$0xff]
    %v120 = vld [vmem:[%s1 + $0x2b0] sm:$0xff]
    %v121 = vld [vmem:[%s1 + $0x2b8] sm:$0xff]
    %v122 = vld [vmem:[%s1 + $0x2c0] sm:$0xff]
    %v123 = vld [vmem:[%s1 + $0x2c8] sm:$0xff]
    %v124 = vld [vmem:[%s1 + $0x2d0] sm:$0xff]
    %v125 = vld [vmem:[%s1 + $0x2d8] sm:$0xff]
    %v126 = vld [vmem:[%s1 + $0x2e0] sm:$0xff]
    %v127 = vld [vmem:[%s1 + $0x2e8] sm:$0xff]
    %v128 = vld [vmem:[%s1 + $0x2f0] sm:$0xff]
    %v129 = vld [vmem:[%s1 + $0x2f8] sm:$0xff]
    %v130 = vld [vmem:[%s1 + $0x300] sm:$0xff]
    %v131 = vld [vmem:[%s1 + $0x308] sm:$0xff]
    %v132 = vld [vmem:[%s1 + $0x310] sm:$0xff]
    %v133 = vld [vmem:[%s1 + $0x318] sm:$0xff]
    %v134 = vld [vmem:[%s1 + $0x320] sm:$0xff]
    %v135 = vld [vmem:[%s1 + $0x328] sm:$0xff]
    %v136 = vld [vmem:[%s1 + $0x330] sm:$0xff]
    %v137 = vld [vmem:[%s1 + $0x338] sm:$0xff]
    %v138 = vld [vmem:[%s1 + $0x340] sm:$0xff]
    %vm139 = vcmask 982016
    %v141 = vsel %vm139, %v29, 0
    %v144 = vsel %vm139, %v30, 0
    %v147 = vsel %vm139, %v31, 0
    %v150 = vsel %vm139, %v32, 0
    %v153 = vsel %vm139, %v33, 0
    %155 = vmatprep.subr.mxu0 0.0
    %156 = vmatpush1.msra.mxu0 0.0
    %157 = vmatprep.subr.mxu0 %v133
    %158 = vmatpush1.msra.mxu0 %v132
    %159 = vmatprep.subr.mxu0 %v126
    %160 = vmatpush1.msra.mxu0 %v125
    %161 = vmatprep.subr.mxu0 %v119
    %162 = vmatpush1.msra.mxu0 %v118
    %163 = vmatprep.subr.mxu0 %v112
    %164 = vmatpush1.msra.mxu0 %v111
    %165 = vmatprep.subr.mxu0 %v105
    %166 = vmatpush1.msra.mxu0 %v104
    %167 = vmatprep.subr.mxu0 %v98
    %168 = vmatpush1.msra.mxu0 %v97
    %169 = vmatprep.subr.mxu0 %v91
    %170 = vmatpush1.msra.mxu0 %v90
    %171 = vmatprep.subr.mxu0 %v84
    %172 = vmatpush1.msra.mxu0 %v83
    %173 = vmatprep.subr.mxu0 %v77
    %174 = vmatpush1.msra.mxu0 %v76
    %175 = vmatprep.subr.mxu0 %v70
    %176 = vmatpush1.msra.mxu0 %v69
    %177 = vmatprep.subr.mxu0 %v63
    %178 = vmatpush1.msra.mxu0 %v62
    %179 = vmatprep.subr.mxu0 %v56
    %180 = vmatpush1.msra.mxu0 %v55
    %181 = vmatprep.subr.mxu0 %v49
    %182 = vmatpush1.msra.mxu0 %v48
    %183 = vmatprep.subr.mxu0 %v42
    %184 = vmatpush1.msra.mxu0 %v41
    %185 = vmatprep.subr.mxu0 %v35
    %186 = vmatpush1.msra.mxu0 %v34
    %187 = vmatprep.subr.mxu0 0.0
    %188 = vmatpush2.msra.mxu0 0.0
    %189 = vmatprep.subr.mxu0 0.0
    %190 = vmatpush2.msra.mxu0 0.0
    %191 = vmatprep.subr.mxu0 0.0
    %192 = vmatpush2.msra.mxu0 0.0
    %193 = vmatprep.subr.mxu0 0.0
    %194 = vmatpush2.msra.mxu0 0.0
    %195 = vmatprep.subr.mxu0 0.0
    %196 = vmatpush2.msra.mxu0 0.0
    %197 = vmatprep.subr.mxu0 0.0
    %198 = vmatpush2.msra.mxu0 0.0
    %199 = vmatprep.subr.mxu0 0.0
    %200 = vmatpush2.msra.mxu0 0.0
    %201 = vmatprep.subr.mxu0 0.0
    %202 = vmatpush2.msra.mxu0 0.0
    %203 = vmatprep.subr.mxu0 0.0
    %204 = vmatpush2.msra.mxu0 0.0
    %205 = vmatprep.subr.mxu0 0.0
    %206 = vmatpush2.msra.mxu0 0.0
    %207 = vmatprep.subr.mxu0 0.0
    %208 = vmatpush2.msra.mxu0 0.0
    %209 = vmatprep.subr.mxu0 0.0
    %210 = vmatpush2.msra.mxu0 0.0
    %211 = vmatprep.subr.mxu0 0.0
    %212 = vmatpush2.msra.mxu0 0.0
    %213 = vmatprep.subr.mxu0 0.0
    %214 = vmatpush2.msra.mxu0 0.0
    %215 = vmatprep.subr.mxu0 0.0
    %216 = vmatpush2.msra.mxu0 0.0
    %217 = vmatprep.subr.mxu0 0.0
    %218 = vmatpush2.msra.mxu0 0.0
    %219 = vmatprep.mubr.f32.mxu0 0.0
    %220 = vmatmul.mubr.f32.gmra.mxu0 %v141
    %v221 = vpop.f32.mrf.mxu0
    %v222 = vadd.f32 0.0, %v221
    %v223 = vpop.f32.mrf.mxu0
    %v224 = vadd.f32 0.0, %v223
    %225 = vmatprep.mubr.f32.mxu0 0.0
    %226 = vmatmul.mubr.f32.gmra.mxu0 %v144
    %v227 = vpop.f32.mrf.mxu0
    %v228 = vadd.f32 0.0, %v227
    %v229 = vpop.f32.mrf.mxu0
    %v230 = vadd.f32 0.0, %v229
    %231 = vmatprep.mubr.f32.mxu0 0.0
    %232 = vmatmul.mubr.f32.gmra.mxu0 %v147
    %v233 = vpop.f32.mrf.mxu0
    %v234 = vadd.f32 0.0, %v233
    %v235 = vpop.f32.mrf.mxu0
    %v236 = vadd.f32 0.0, %v235
    %237 = vmatprep.mubr.f32.mxu0 0.0
    %238 = vmatmul.mubr.f32.gmra.mxu0 %v150
    %v239 = vpop.f32.mrf.mxu0
    %v240 = vadd.f32 0.0, %v239
    %v241 = vpop.f32.mrf.mxu0
    %v242 = vadd.f32 0.0, %v241
    %243 = vmatprep.mubr.f32.mxu0 0.0
    %244 = vmatmul.mubr.f32.gmra.mxu0 %v153
    %v245 = vpop.f32.mrf.mxu0
    %v246 = vadd.f32 0.0, %v245
    %v247 = vpop.f32.mrf.mxu0
    %v248 = vadd.f32 0.0, %v247
    %249 = vdwg.mxu0
    %250 = vmatprep.subr.mxu0 0.0
    %251 = vmatpush1.msra.mxu0 0.0
    %252 = vmatprep.subr.mxu0 %v135
    %253 = vmatpush1.msra.mxu0 %v134
    %254 = vmatprep.subr.mxu0 %v128
    %255 = vmatpush1.msra.mxu0 %v127
    %256 = vmatprep.subr.mxu0 %v121
    %257 = vmatpush1.msra.mxu0 %v120
    %258 = vmatprep.subr.mxu0 %v114
    %259 = vmatpush1.msra.mxu0 %v113
    %260 = vmatprep.subr.mxu0 %v107
    %261 = vmatpush1.msra.mxu0 %v106
    %262 = vmatprep.subr.mxu0 %v100
    %263 = vmatpush1.msra.mxu0 %v99
    %264 = vmatprep.subr.mxu0 %v93
    %265 = vmatpush1.msra.mxu0 %v92
    %266 = vmatprep.subr.mxu0 %v86
    %267 = vmatpush1.msra.mxu0 %v85
    %268 = vmatprep.subr.mxu0 %v79
    %269 = vmatpush1.msra.mxu0 %v78
    %270 = vmatprep.subr.mxu0 %v72
    %271 = vmatpush1.msra.mxu0 %v71
    %272 = vmatprep.subr.mxu0 %v65
    %273 = vmatpush1.msra.mxu0 %v64
    %274 = vmatprep.subr.mxu0 %v58
    %275 = vmatpush1.msra.mxu0 %v57
    %276 = vmatprep.subr.mxu0 %v51
    %277 = vmatpush1.msra.mxu0 %v50
    %278 = vmatprep.subr.mxu0 %v44
    %279 = vmatpush1.msra.mxu0 %v43
    %280 = vmatprep.subr.mxu0 %v37
    %281 = vmatpush1.msra.mxu0 %v36
    %282 = vmatprep.subr.mxu0 0.0
    %283 = vmatpush2.msra.mxu0 0.0
    %284 = vmatprep.subr.mxu0 0.0
    %285 = vmatpush2.msra.mxu0 0.0
    %286 = vmatprep.subr.mxu0 0.0
    %287 = vmatpush2.msra.mxu0 0.0
    %288 = vmatprep.subr.mxu0 0.0
    %289 = vmatpush2.msra.mxu0 0.0
    %290 = vmatprep.subr.mxu0 0.0
    %291 = vmatpush2.msra.mxu0 0.0
    %292 = vmatprep.subr.mxu0 0.0
    %293 = vmatpush2.msra.mxu0 0.0
    %294 = vmatprep.subr.mxu0 0.0
    %295 = vmatpush2.msra.mxu0 0.0
    %296 = vmatprep.subr.mxu0 0.0
    %297 = vmatpush2.msra.mxu0 0.0
    %298 = vmatprep.subr.mxu0 0.0
    %299 = vmatpush2.msra.mxu0 0.0
    %300 = vmatprep.subr.mxu0 0.0
    %301 = vmatpush2.msra.mxu0 0.0
    %302 = vmatprep.subr.mxu0 0.0
    %303 = vmatpush2.msra.mxu0 0.0
    %304 = vmatprep.subr.mxu0 0.0
    %305 = vmatpush2.msra.mxu0 0.0
    %306 = vmatprep.subr.mxu0 0.0
    %307 = vmatpush2.msra.mxu0 0.0
    %308 = vmatprep.subr.mxu0 0.0
    %309 = vmatpush2.msra.mxu0 0.0
    %310 = vmatprep.subr.mxu0 0.0
    %311 = vmatpush2.msra.mxu0 0.0
    %312 = vmatprep.subr.mxu0 0.0
    %313 = vmatpush2.msra.mxu0 0.0
    %314 = vmatprep.mubr.f32.mxu0 0.0
    %315 = vmatmul.mubr.f32.gmra.mxu0 %v141
    %v316 = vpop.f32.mrf.mxu0
    %v317 = vadd.f32 0.0, %v316
    %v318 = vpop.f32.mrf.mxu0
    %v319 = vadd.f32 0.0, %v318
    %320 = vmatprep.mubr.f32.mxu0 0.0
    %321 = vmatmul.mubr.f32.gmra.mxu0 %v144
    %v322 = vpop.f32.mrf.mxu0
    %v323 = vadd.f32 0.0, %v322
    %v324 = vpop.f32.mrf.mxu0
    %v325 = vadd.f32 0.0, %v324
    %326 = vmatprep.mubr.f32.mxu0 0.0
    %327 = vmatmul.mubr.f32.gmra.mxu0 %v147
    %v328 = vpop.f32.mrf.mxu0
    %v329 = vadd.f32 0.0, %v328
    %v330 = vpop.f32.mrf.mxu0
    %v331 = vadd.f32 0.0, %v330
    %332 = vmatprep.mubr.f32.mxu0 0.0
    %333 = vmatmul.mubr.f32.gmra.mxu0 %v150
    %v334 = vpop.f32.mrf.mxu0
    %v335 = vadd.f32 0.0, %v334
    %v336 = vpop.f32.mrf.mxu0
    %v337 = vadd.f32 0.0, %v336
    %338 = vmatprep.mubr.f32.mxu0 0.0
    %339 = vmatmul.mubr.f32.gmra.mxu0 %v153
    %v340 = vpop.f32.mrf.mxu0
    %v341 = vadd.f32 0.0, %v340
    %v342 = vpop.f32.mrf.mxu0
    %v343 = vadd.f32 0.0, %v342
    %344 = vdwg.mxu0
    %345 = vmatprep.subr.mxu0 0.0
    %346 = vmatpush1.msra.mxu0 0.0
    %347 = vmatprep.subr.mxu0 %v137
    %348 = vmatpush1.msra.mxu0 %v136
    %349 = vmatprep.subr.mxu0 %v130
    %350 = vmatpush1.msra.mxu0 %v129
    %351 = vmatprep.subr.mxu0 %v123
    %352 = vmatpush1.msra.mxu0 %v122
    %353 = vmatprep.subr.mxu0 %v116
    %354 = vmatpush1.msra.mxu0 %v115
    %355 = vmatprep.subr.mxu0 %v109
    %356 = vmatpush1.msra.mxu0 %v108
    %357 = vmatprep.subr.mxu0 %v102
    %358 = vmatpush1.msra.mxu0 %v101
    %359 = vmatprep.subr.mxu0 %v95
    %360 = vmatpush1.msra.mxu0 %v94
    %361 = vmatprep.subr.mxu0 %v88
    %362 = vmatpush1.msra.mxu0 %v87
    %363 = vmatprep.subr.mxu0 %v81
    %364 = vmatpush1.msra.mxu0 %v80
    %365 = vmatprep.subr.mxu0 %v74
    %366 = vmatpush1.msra.mxu0 %v73
    %367 = vmatprep.subr.mxu0 %v67
    %368 = vmatpush1.msra.mxu0 %v66
    %369 = vmatprep.subr.mxu0 %v60
    %370 = vmatpush1.msra.mxu0 %v59
    %371 = vmatprep.subr.mxu0 %v53
    %372 = vmatpush1.msra.mxu0 %v52
    %373 = vmatprep.subr.mxu0 %v46
    %374 = vmatpush1.msra.mxu0 %v45
    %375 = vmatprep.subr.mxu0 %v39
    %376 = vmatpush1.msra.mxu0 %v38
    %377 = vmatprep.subr.mxu0 0.0
    %378 = vmatpush2.msra.mxu0 0.0
    %379 = vmatprep.subr.mxu0 0.0
    %380 = vmatpush2.msra.mxu0 0.0
    %381 = vmatprep.subr.mxu0 0.0
    %382 = vmatpush2.msra.mxu0 0.0
    %383 = vmatprep.subr.mxu0 0.0
    %384 = vmatpush2.msra.mxu0 0.0
    %385 = vmatprep.subr.mxu0 0.0
    %386 = vmatpush2.msra.mxu0 0.0
    %387 = vmatprep.subr.mxu0 0.0
    %388 = vmatpush2.msra.mxu0 0.0
    %389 = vmatprep.subr.mxu0 0.0
    %390 = vmatpush2.msra.mxu0 0.0
    %391 = vmatprep.subr.mxu0 0.0
    %392 = vmatpush2.msra.mxu0 0.0
    %393 = vmatprep.subr.mxu0 0.0
    %394 = vmatpush2.msra.mxu0 0.0
    %395 = vmatprep.subr.mxu0 0.0
    %396 = vmatpush2.msra.mxu0 0.0
    %397 = vmatprep.subr.mxu0 0.0
    %398 = vmatpush2.msra.mxu0 0.0
    %399 = vmatprep.subr.mxu0 0.0
    %400 = vmatpush2.msra.mxu0 0.0
    %401 = vmatprep.subr.mxu0 0.0
    %402 = vmatpush2.msra.mxu0 0.0
    %403 = vmatprep.subr.mxu0 0.0
    %404 = vmatpush2.msra.mxu0 0.0
    %405 = vmatprep.subr.mxu0 0.0
    %406 = vmatpush2.msra.mxu0 0.0
    %407 = vmatprep.subr.mxu0 0.0
    %408 = vmatpush2.msra.mxu0 0.0
    %409 = vmatprep.mubr.f32.mxu0 0.0
    %410 = vmatmul.mubr.f32.gmra.mxu0 %v141
    %v411 = vpop.f32.mrf.mxu0
    %v412 = vadd.f32 0.0, %v411
    %v413 = vpop.f32.mrf.mxu0
    %v414 = vadd.f32 0.0, %v413
    %415 = vmatprep.mubr.f32.mxu0 0.0
    %416 = vmatmul.mubr.f32.gmra.mxu0 %v144
    %v417 = vpop.f32.mrf.mxu0
    %v418 = vadd.f32 0.0, %v417
    %v419 = vpop.f32.mrf.mxu0
    %v420 = vadd.f32 0.0, %v419
    %421 = vmatprep.mubr.f32.mxu0 0.0
    %422 = vmatmul.mubr.f32.gmra.mxu0 %v147
    %v423 = vpop.f32.mrf.mxu0
    %v424 = vadd.f32 0.0, %v423
    %v425 = vpop.f32.mrf.mxu0
    %v426 = vadd.f32 0.0, %v425
    %427 = vmatprep.mubr.f32.mxu0 0.0
    %428 = vmatmul.mubr.f32.gmra.mxu0 %v150
    %v429 = vpop.f32.mrf.mxu0
    %v430 = vadd.f32 0.0, %v429
    %v431 = vpop.f32.mrf.mxu0
    %v432 = vadd.f32 0.0, %v431
    %433 = vmatprep.mubr.f32.mxu0 0.0
    %434 = vmatmul.mubr.f32.gmra.mxu0 %v153
    %v435 = vpop.f32.mrf.mxu0
    %v436 = vadd.f32 0.0, %v435
    %v437 = vpop.f32.mrf.mxu0
    %v438 = vadd.f32 0.0, %v437
    %439 = vdwg.mxu0
    %440 = vmatprep.subr.mxu0 0.0
    %441 = vmatpush1.msra.mxu0 0.0
    %442 = vmatprep.subr.mxu0 0.0
    %443 = vmatpush1.msra.mxu0 %v138
    %444 = vmatprep.subr.mxu0 0.0
    %445 = vmatpush1.msra.mxu0 %v131
    %446 = vmatprep.subr.mxu0 0.0
    %447 = vmatpush1.msra.mxu0 %v124
    %448 = vmatprep.subr.mxu0 0.0
    %449 = vmatpush1.msra.mxu0 %v117
    %450 = vmatprep.subr.mxu0 0.0
    %451 = vmatpush1.msra.mxu0 %v110
    %452 = vmatprep.subr.mxu0 0.0
    %453 = vmatpush1.msra.mxu0 %v103
    %454 = vmatprep.subr.mxu0 0.0
    %455 = vmatpush1.msra.mxu0 %v96
    %456 = vmatprep.subr.mxu0 0.0
    %457 = vmatpush1.msra.mxu0 %v89
    %458 = vmatprep.subr.mxu0 0.0
    %459 = vmatpush1.msra.mxu0 %v82
    %460 = vmatprep.subr.mxu0 0.0
    %461 = vmatpush1.msra.mxu0 %v75
    %462 = vmatprep.subr.mxu0 0.0
    %463 = vmatpush1.msra.mxu0 %v68
    %464 = vmatprep.subr.mxu0 0.0
    %465 = vmatpush1.msra.mxu0 %v61
    %466 = vmatprep.subr.mxu0 0.0
    %467 = vmatpush1.msra.mxu0 %v54
    %468 = vmatprep.subr.mxu0 0.0
    %469 = vmatpush1.msra.mxu0 %v47
    %470 = vmatprep.subr.mxu0 0.0
    %471 = vmatpush1.msra.mxu0 %v40
    %472 = vmatprep.subr.mxu0 0.0
    %473 = vmatpush2.msra.mxu0 0.0
    %474 = vmatprep.subr.mxu0 0.0
    %475 = vmatpush2.msra.mxu0 0.0
    %476 = vmatprep.subr.mxu0 0.0
    %477 = vmatpush2.msra.mxu0 0.0
    %478 = vmatprep.subr.mxu0 0.0
    %479 = vmatpush2.msra.mxu0 0.0
    %480 = vmatprep.subr.mxu0 0.0
    %481 = vmatpush2.msra.mxu0 0.0
    %482 = vmatprep.subr.mxu0 0.0
    %483 = vmatpush2.msra.mxu0 0.0
    %484 = vmatprep.subr.mxu0 0.0
    %485 = vmatpush2.msra.mxu0 0.0
    %486 = vmatprep.subr.mxu0 0.0
    %487 = vmatpush2.msra.mxu0 0.0
    %488 = vmatprep.subr.mxu0 0.0
    %489 = vmatpush2.msra.mxu0 0.0
    %490 = vmatprep.subr.mxu0 0.0
    %491 = vmatpush2.msra.mxu0 0.0
    %492 = vmatprep.subr.mxu0 0.0
    %493 = vmatpush2.msra.mxu0 0.0
    %494 = vmatprep.subr.mxu0 0.0
    %495 = vmatpush2.msra.mxu0 0.0
    %496 = vmatprep.subr.mxu0 0.0
    %497 = vmatpush2.msra.mxu0 0.0
    %498 = vmatprep.subr.mxu0 0.0
    %499 = vmatpush2.msra.mxu0 0.0
    %500 = vmatprep.subr.mxu0 0.0
    %501 = vmatpush2.msra.mxu0 0.0
    %502 = vmatprep.subr.mxu0 0.0
    %503 = vmatpush2.msra.mxu0 0.0
    %504 = vmatprep.mubr.f32.mxu0 0.0
    %505 = vmatmul.mubr.f32.gmra.mxu0 %v141
    %v506 = vpop.f32.mrf.mxu0
    %v507 = vadd.f32 0.0, %v506
    %v508 = vpop.f32.mrf.mxu0
    %509 = vmatprep.mubr.f32.mxu0 0.0
    %510 = vmatmul.mubr.f32.gmra.mxu0 %v144
    %v511 = vpop.f32.mrf.mxu0
    %v512 = vadd.f32 0.0, %v511
    %v513 = vpop.f32.mrf.mxu0
    %514 = vmatprep.mubr.f32.mxu0 0.0
    %515 = vmatmul.mubr.f32.gmra.mxu0 %v147
    %v516 = vpop.f32.mrf.mxu0
    %v517 = vadd.f32 0.0, %v516
    %v518 = vpop.f32.mrf.mxu0
    %519 = vmatprep.mubr.f32.mxu0 0.0
    %520 = vmatmul.mubr.f32.gmra.mxu0 %v150
    %v521 = vpop.f32.mrf.mxu0
    %v522 = vadd.f32 0.0, %v521
    %v523 = vpop.f32.mrf.mxu0
    %524 = vmatprep.mubr.f32.mxu0 0.0
    %525 = vmatmul.mubr.f32.gmra.mxu0 %v153
    %v526 = vpop.f32.mrf.mxu0
    %v527 = vadd.f32 0.0, %v526
    %v528 = vpop.f32.mrf.mxu0
    %529 = vdwg.mxu0
    %v530 = vadd.f32 %v222, %v224
    %v531 = vadd.f32 %v530, %v317
    %v532 = vadd.f32 %v531, %v319
    %v533 = vadd.f32 %v532, %v412
    %v534 = vadd.f32 %v533, %v414
    %vm535 = vcmask 130048
    %v536 = vsel %vm535, %v507, 0.0
    %v537 = vadd.f32 %v534, %v536
    %538 = vadd.xlane.f32.xlu0 %v537
    %v539 = vpop.xlane.xlu0 %538
    %v540 = vadd.f32 %v228, %v230
    %v541 = vadd.f32 %v540, %v323
    %v542 = vadd.f32 %v541, %v325
    %v543 = vadd.f32 %v542, %v418
    %v544 = vadd.f32 %v543, %v420
    %v545 = vsel %vm535, %v512, 0.0
    %v546 = vadd.f32 %v544, %v545
    %547 = vadd.xlane.f32.xlu0 %v546
    %v548 = vpop.xlane.xlu0 %547
    %v549 = vadd.f32 %v234, %v236
    %v550 = vadd.f32 %v549, %v329
    %v551 = vadd.f32 %v550, %v331
    %v552 = vadd.f32 %v551, %v424
    %v553 = vadd.f32 %v552, %v426
    %v554 = vsel %vm535, %v517, 0.0
    %v555 = vadd.f32 %v553, %v554
    %556 = vadd.xlane.f32.xlu0 %v555
    %v557 = vpop.xlane.xlu0 %556
    %v558 = vadd.f32 %v240, %v242
    %v559 = vadd.f32 %v558, %v335
    %v560 = vadd.f32 %v559, %v337
    %v561 = vadd.f32 %v560, %v430
    %v562 = vadd.f32 %v561, %v432
    %v563 = vsel %vm535, %v522, 0.0
    %v564 = vadd.f32 %v562, %v563
    %565 = vadd.xlane.f32.xlu0 %v564
    %v566 = vpop.xlane.xlu0 %565
    %v567 = vadd.f32 %v246, %v248
    %v568 = vadd.f32 %v567, %v341
    %v569 = vadd.f32 %v568, %v343
    %v570 = vadd.f32 %v569, %v436
    %v571 = vadd.f32 %v570, %v438
    %v572 = vsel %vm535, %v527, 0.0
    %v573 = vadd.f32 %v571, %v572
    %574 = vadd.xlane.f32.xlu0 %v573
    %v575 = vpop.xlane.xlu0 %574
    %v576 = vmul.f32 %v539, 0.0012755102
    %v577 = vmul.f32 %v548, 0.0012755102
    %v578 = vmul.f32 %v557, 0.0012755102
    %v579 = vmul.f32 %v566, 0.0012755102
    %v580 = vmul.f32 %v575, 0.0012755102
    %v581 = vsub.f32 %v222, %v576
    %v582 = vsub.f32 %v224, %v576
    %v583 = vsub.f32 %v317, %v576
    %v584 = vsub.f32 %v319, %v576
    %v585 = vsub.f32 %v412, %v576
    %v586 = vsub.f32 %v414, %v576
    %v587 = vsub.f32 %v507, %v576
    %v588 = vsub.f32 %v228, %v577
    %v589 = vsub.f32 %v230, %v577
    %v590 = vsub.f32 %v323, %v577
    %v591 = vsub.f32 %v325, %v577
    %v592 = vsub.f32 %v418, %v577
    %v593 = vsub.f32 %v420, %v577
    %v594 = vsub.f32 %v512, %v577
    %v595 = vsub.f32 %v234, %v578
    %v596 = vsub.f32 %v236, %v578
    %v597 = vsub.f32 %v329, %v578
    %v598 = vsub.f32 %v331, %v578
    %v599 = vsub.f32 %v424, %v578
    %v600 = vsub.f32 %v426, %v578
    %v601 = vsub.f32 %v517, %v578
    %v602 = vsub.f32 %v240, %v579
    %v603 = vsub.f32 %v242, %v579
    %v604 = vsub.f32 %v335, %v579
    %v605 = vsub.f32 %v337, %v579
    %v606 = vsub.f32 %v430, %v579
    %v607 = vsub.f32 %v432, %v579
    %v608 = vsub.f32 %v522, %v579
    %v609 = vsub.f32 %v246, %v580
    %v610 = vsub.f32 %v248, %v580
    %v611 = vsub.f32 %v341, %v580
    %v612 = vsub.f32 %v343, %v580
    %v613 = vsub.f32 %v436, %v580
    %v614 = vsub.f32 %v438, %v580
    %v615 = vsub.f32 %v527, %v580
    %v616 = vmul.f32 %v581, %v581
    %v617 = vmul.f32 %v582, %v582
    %v618 = vmul.f32 %v583, %v583
    %v619 = vmul.f32 %v584, %v584
    %v620 = vmul.f32 %v585, %v585
    %v621 = vmul.f32 %v586, %v586
    %v622 = vmul.f32 %v587, %v587
    %v623 = vmul.f32 %v588, %v588
    %v624 = vmul.f32 %v589, %v589
    %v625 = vmul.f32 %v590, %v590
    %v626 = vmul.f32 %v591, %v591
    %v627 = vmul.f32 %v592, %v592
    %v628 = vmul.f32 %v593, %v593
    %v629 = vmul.f32 %v594, %v594
    %v630 = vmul.f32 %v595, %v595
    %v631 = vmul.f32 %v596, %v596
    %v632 = vmul.f32 %v597, %v597
    %v633 = vmul.f32 %v598, %v598
    %v634 = vmul.f32 %v599, %v599
    %v635 = vmul.f32 %v600, %v600
    %v636 = vmul.f32 %v601, %v601
    %v637 = vmul.f32 %v602, %v602
    %v638 = vmul.f32 %v603, %v603
    %v639 = vmul.f32 %v604, %v604
    %v640 = vmul.f32 %v605, %v605
    %v641 = vmul.f32 %v606, %v606
    %v642 = vmul.f32 %v607, %v607
    %v643 = vmul.f32 %v608, %v608
    %v644 = vmul.f32 %v609, %v609
    %v645 = vmul.f32 %v610, %v610
    %v646 = vmul.f32 %v611, %v611
    %v647 = vmul.f32 %v612, %v612
    %v648 = vmul.f32 %v613, %v613
    %v649 = vmul.f32 %v614, %v614
    %v650 = vmul.f32 %v615, %v615
    %v651 = vadd.f32 %v616, %v617
    %v652 = vadd.f32 %v651, %v618
    %v653 = vadd.f32 %v652, %v619
    %v654 = vadd.f32 %v653, %v620
    %v655 = vadd.f32 %v654, %v621
    %v656 = vsel %vm535, %v622, 0.0
    %v657 = vadd.f32 %v655, %v656
    %658 = vadd.xlane.f32.xlu0 %v657
    %v659 = vpop.xlane.xlu0 %658
    %v660 = vadd.f32 %v623, %v624
    %v661 = vadd.f32 %v660, %v625
    %v662 = vadd.f32 %v661, %v626
    %v663 = vadd.f32 %v662, %v627
    %v664 = vadd.f32 %v663, %v628
    %v665 = vsel %vm535, %v629, 0.0
    %v666 = vadd.f32 %v664, %v665
    %667 = vadd.xlane.f32.xlu0 %v666
    %v668 = vpop.xlane.xlu0 %667
    %v669 = vadd.f32 %v630, %v631
    %v670 = vadd.f32 %v669, %v632
    %v671 = vadd.f32 %v670, %v633
    %v672 = vadd.f32 %v671, %v634
    %v673 = vadd.f32 %v672, %v635
    %v674 = vsel %vm535, %v636, 0.0
    %v675 = vadd.f32 %v673, %v674
    %676 = vadd.xlane.f32.xlu0 %v675
    %v677 = vpop.xlane.xlu0 %676
    %v678 = vadd.f32 %v637, %v638
    %v679 = vadd.f32 %v678, %v639
    %v680 = vadd.f32 %v679, %v640
    %v681 = vadd.f32 %v680, %v641
    %v682 = vadd.f32 %v681, %v642
    %v683 = vsel %vm535, %v643, 0.0
    %v684 = vadd.f32 %v682, %v683
    %685 = vadd.xlane.f32.xlu0 %v684
    %v686 = vpop.xlane.xlu0 %685
    %v687 = vadd.f32 %v644, %v645
    %v688 = vadd.f32 %v687, %v646
    %v689 = vadd.f32 %v688, %v647
    %v690 = vadd.f32 %v689, %v648
    %v691 = vadd.f32 %v690, %v649
    %v692 = vsel %vm535, %v650, 0.0
    %v693 = vadd.f32 %v691, %v692
    %694 = vadd.xlane.f32.xlu0 %v693
    %v695 = vpop.xlane.xlu0 %694
    %v696 = vmul.f32 %v659, 0.0012755102
    %v697 = vmul.f32 %v668, 0.0012755102
    %v698 = vmul.f32 %v677, 0.0012755102
    %v699 = vmul.f32 %v686, 0.0012755102
    %v700 = vmul.f32 %v695, 0.0012755102
    %v701 = vld [vmem:[%s2] sm:$0xff]
    %v702 = vld [vmem:[%s2 + $0x8] sm:$0xff]
    %v703 = vld [vmem:[%s2 + $0x10] sm:$0xff]
    %v704 = vld [vmem:[%s2 + $0x18] sm:$0xff]
    %v705 = vld [vmem:[%s2 + $0x20] sm:$0xff]
    %v706 = vadd.f32 %v696, 0.001
    %v707 = vadd.f32 %v697, 0.001
    %v708 = vadd.f32 %v698, 0.001
    %v709 = vadd.f32 %v699, 0.001
    %v710 = vadd.f32 %v700, 0.001
    %v711 = vrsqrt.pop %v706
    %v712 = vrsqrt.pop %v707
    %v713 = vrsqrt.pop %v708
    %v714 = vrsqrt.pop %v709
    %v715 = vrsqrt.pop %v710
    %v716 = vmul.f32 %v701, %v711
    %v717 = vmul.f32 %v702, %v712
    %v718 = vmul.f32 %v703, %v713
    %v719 = vmul.f32 %v704, %v714
    %v720 = vmul.f32 %v705, %v715
    %722 = vset.pattern.permute.xlu0 0
    %723 = vperm.xlu0 %722, %v716
    %v724 = vpop.permute.xlu0 %723
    %727 = vset.pattern.permute.xlu0 0
    %728 = vperm.xlu0 %727, %v717
    %v729 = vpop.permute.xlu0 %728
    %732 = vset.pattern.permute.xlu0 0
    %733 = vperm.xlu0 %732, %v718
    %v734 = vpop.permute.xlu0 %733
    %737 = vset.pattern.permute.xlu0 0
    %738 = vperm.xlu0 %737, %v719
    %v739 = vpop.permute.xlu0 %738
    %742 = vset.pattern.permute.xlu0 0
    %743 = vperm.xlu0 %742, %v720
    %v744 = vpop.permute.xlu0 %743
    %v746 = vmul.f32 %v581, %v724
    %v747 = vmul.f32 %v582, %v724
    %v748 = vmul.f32 %v583, %v724
    %v749 = vmul.f32 %v584, %v724
    %v750 = vmul.f32 %v585, %v724
    %v751 = vmul.f32 %v586, %v724
    %v752 = vmul.f32 %v587, %v724
    %v753 = vmul.f32 %v588, %v729
    %v754 = vmul.f32 %v589, %v729
    %v755 = vmul.f32 %v590, %v729
    %v756 = vmul.f32 %v591, %v729
    %v757 = vmul.f32 %v592, %v729
    %v758 = vmul.f32 %v593, %v729
    %v759 = vmul.f32 %v594, %v729
    %v760 = vmul.f32 %v595, %v734
    %v761 = vmul.f32 %v596, %v734
    %v762 = vmul.f32 %v597, %v734
    %v763 = vmul.f32 %v598, %v734
    %v764 = vmul.f32 %v599, %v734
    %v765 = vmul.f32 %v600, %v734
    %v766 = vmul.f32 %v601, %v734
    %v767 = vmul.f32 %v602, %v739
    %v768 = vmul.f32 %v603, %v739
    %v769 = vmul.f32 %v604, %v739
    %v770 = vmul.f32 %v605, %v739
    %v771 = vmul.f32 %v606, %v739
    %v772 = vmul.f32 %v607, %v739
    %v773 = vmul.f32 %v608, %v739
    %v774 = vmul.f32 %v609, %v744
    %v775 = vmul.f32 %v610, %v744
    %v776 = vmul.f32 %v611, %v744
    %v777 = vmul.f32 %v612, %v744
    %v778 = vmul.f32 %v613, %v744
    %v779 = vmul.f32 %v614, %v744
    %v780 = vmul.f32 %v615, %v744
    %782 = vset.pattern.permute.xlu0 1
    %783 = vperm.xlu0 %782, %v701
    %v784 = vpop.permute.xlu0 %783
    %787 = vset.pattern.permute.xlu0 1
    %788 = vperm.xlu0 %787, %v702
    %v789 = vpop.permute.xlu0 %788
    %792 = vset.pattern.permute.xlu0 1
    %793 = vperm.xlu0 %792, %v703
    %v794 = vpop.permute.xlu0 %793
    %797 = vset.pattern.permute.xlu0 1
    %798 = vperm.xlu0 %797, %v704
    %v799 = vpop.permute.xlu0 %798
    %802 = vset.pattern.permute.xlu0 1
    %803 = vperm.xlu0 %802, %v705
    %v804 = vpop.permute.xlu0 %803
    %v806 = vadd.f32 %v746, %v784
    %v807 = vadd.f32 %v747, %v784
    %v808 = vadd.f32 %v748, %v784
    %v809 = vadd.f32 %v749, %v784
    %v810 = vadd.f32 %v750, %v784
    %v811 = vadd.f32 %v751, %v784
    %v812 = vadd.f32 %v752, %v784
    %v813 = vadd.f32 %v753, %v789
    %v814 = vadd.f32 %v754, %v789
    %v815 = vadd.f32 %v755, %v789
    %v816 = vadd.f32 %v756, %v789
    %v817 = vadd.f32 %v757, %v789
    %v818 = vadd.f32 %v758, %v789
    %v819 = vadd.f32 %v759, %v789
    %v820 = vadd.f32 %v760, %v794
    %v821 = vadd.f32 %v761, %v794
    %v822 = vadd.f32 %v762, %v794
    %v823 = vadd.f32 %v763, %v794
    %v824 = vadd.f32 %v764, %v794
    %v825 = vadd.f32 %v765, %v794
    %v826 = vadd.f32 %v766, %v794
    %v827 = vadd.f32 %v767, %v799
    %v828 = vadd.f32 %v768, %v799
    %v829 = vadd.f32 %v769, %v799
    %v830 = vadd.f32 %v770, %v799
    %v831 = vadd.f32 %v771, %v799
    %v832 = vadd.f32 %v772, %v799
    %v833 = vadd.f32 %v773, %v799
    %v834 = vadd.f32 %v774, %v804
    %v835 = vadd.f32 %v775, %v804
    %v836 = vadd.f32 %v776, %v804
    %v837 = vadd.f32 %v777, %v804
    %v838 = vadd.f32 %v778, %v804
    %v839 = vadd.f32 %v779, %v804
    %v840 = vadd.f32 %v780, %v804
    %841 = vst [vmem:[#allocation2] sm:$0xff] %v806
    %842 = vst [vmem:[#allocation2 + $0x8] sm:$0xff] %v807
    %843 = vst [vmem:[#allocation2 + $0x10] sm:$0xff] %v808
    %844 = vst [vmem:[#allocation2 + $0x18] sm:$0xff] %v809
    %845 = vst [vmem:[#allocation2 + $0x20] sm:$0xff] %v810
    %846 = vst [vmem:[#allocation2 + $0x28] sm:$0xff] %v811
    %847 = vst.msk [vmem:[#allocation2 + $0x30] sm:$0xff] %vm535, %v812
    %848 = vst [vmem:[#allocation2 + $0x38] sm:$0xff] %v813
    %849 = vst [vmem:[#allocation2 + $0x40] sm:$0xff] %v814
    %850 = vst [vmem:[#allocation2 + $0x48] sm:$0xff] %v815
    %851 = vst [vmem:[#allocation2 + $0x50] sm:$0xff] %v816
    %852 = vst [vmem:[#allocation2 + $0x58] sm:$0xff] %v817
    %853 = vst [vmem:[#allocation2 + $0x60] sm:$0xff] %v818
    %854 = vst.msk [vmem:[#allocation2 + $0x68] sm:$0xff] %vm535, %v819
    %855 = vst [vmem:[#allocation2 + $0x70] sm:$0xff] %v820
    %856 = vst [vmem:[#allocation2 + $0x78] sm:$0xff] %v821
    %857 = vst [vmem:[#allocation2 + $0x80] sm:$0xff] %v822
    %858 = vst [vmem:[#allocation2 + $0x88] sm:$0xff] %v823
    %859 = vst [vmem:[#allocation2 + $0x90] sm:$0xff] %v824
    %860 = vst [vmem:[#allocation2 + $0x98] sm:$0xff] %v825
    %861 = vst.msk [vmem:[#allocation2 + $0xa0] sm:$0xff] %vm535, %v826
    %862 = vst [vmem:[#allocation2 + $0xa8] sm:$0xff] %v827
    %863 = vst [vmem:[#allocation2 + $0xb0] sm:$0xff] %v828
    %864 = vst [vmem:[#allocation2 + $0xb8] sm:$0xff] %v829
    %865 = vst [vmem:[#allocation2 + $0xc0] sm:$0xff] %v830
    %866 = vst [vmem:[#allocation2 + $0xc8] sm:$0xff] %v831
    %867 = vst [vmem:[#allocation2 + $0xd0] sm:$0xff] %v832
    %868 = vst.msk [vmem:[#allocation2 + $0xd8] sm:$0xff] %vm535, %v833
    %869 = vst [vmem:[#allocation2 + $0xe0] sm:$0xff] %v834
    %870 = vst [vmem:[#allocation2 + $0xe8] sm:$0xff] %v835
    %871 = vst [vmem:[#allocation2 + $0xf0] sm:$0xff] %v836
    %872 = vst [vmem:[#allocation2 + $0xf8] sm:$0xff] %v837
    %873 = vst [vmem:[#allocation2 + $0x100] sm:$0xff] %v838
    %874 = vst [vmem:[#allocation2 + $0x108] sm:$0xff] %v839
    %875 = vst.msk [vmem:[#allocation2 + $0x110] sm:$0xff] %vm535, %v840
    // Predicated region
    $region14: #{tpu_custom_call.1} parent=1 // pred_check
      _
    $region15: #{tpu_custom_call.1} parent=1 // pred_check_branch
      %877 = sbr.rel (0) target = $region17
    $region16: #{tpu_custom_call.1} parent=1 // pred_region
      %s879 = ssub.s32 4480, 4480
      %880 = vsyncadd [#allocation3], %s879
      %s881 = sshll.u32 [#allocation2], 4
      %s882 = int_to_ptr.vmem [resolvable:$true] %s881
      %887 = dma.vmem_to_hbm [thread:$0]  %s882, 4480, %s3, [#allocation3], 896, 896, 56
    $region17: #{tpu_custom_call.1} parent=1 // pred_fallthru
      _
    // Predicated region
    $region18: #{tpu_custom_call.1} parent=1 // pred_check
      _
    $region19: #{tpu_custom_call.1} parent=1 // pred_check_branch
      %889 = sbr.rel (0) target = $region21
    $region20: #{tpu_custom_call.1} parent=1 // pred_region
      %890 = dma.done [#allocation3], 4480
    $region21: #{tpu_custom_call.1} parent=1 // pred_fallthru
      _
    %891 = vsyncpa [#allocation3], 1

</llo_original>
